<compile_context>
chip_gen: v5e
topology: v5e:2x2
jax: 0.10.0
libtpu: 0.0.40
codegen_flags: <defaults>
</compile_context>

<pallas_src>
import jax
import jax.numpy as jnp
from jax.experimental import pallas as pl
from jax.experimental.pallas import tpu as pltpu

LANE = 128  # TPU lane width; pad every feature dim to a multiple of this.


def _round_up(n, m):
    return ((n + m - 1) // m) * m


def _vmem_cap_bytes():
    """Generation-aware VMEM cap (~85% of physical): ~108 MiB on v5e/v6e
    (128 MiB parts), ~54 MiB on v7x (64 MiB per TC)."""
    phys = 64 * 1024 * 1024
    try:
        info = pltpu.get_tpu_info()
        phys = int(getattr(info, "vmem_capacity_bytes", phys))
    except Exception:
        pass
    return int(phys * 0.85)


def _choose_batch_tile(batch_pad8, max_tb=512):
    """Batch tile: multiple of 8, <= max_tb, and (when the batch allows it)
    small enough that the grid has >= 2 steps so the 'parallel' axis can be
    split across v7x's two TensorCores."""
    if batch_pad8 <= 8:
        return batch_pad8
    half = _round_up(pl.cdiv(batch_pad8, 2), 8)
    return min(max_tb, half)


# --------------------------------------------------------------------------
# Kernel
# --------------------------------------------------------------------------
def autoencoder_kernel(
    x_ref,                              # (TB, in_pad)  f32 (cast to bf16 here)
    ew1, eb1, ew2, eb2, ew3, eb3,       # encoder: in -> h1 -> h2 -> out
    dw1, db1, dw2, db2, dw3, db3,       # decoder: out -> h2 -> h1 -> in
    o_ref,                              # (TB, in_pad)  bf16
):
    # In-kernel cast (VPU work hidden under the MXU stream).
    x = x_ref[...].astype(jnp.bfloat16)

    # ---------------- encoder (bf16 MXU inputs, f32 accumulation) ----------
    z = jnp.dot(x, ew1[...], preferred_element_type=jnp.float32) + eb1[...]
    z = jnp.dot(z.astype(jnp.bfloat16), ew2[...],
                preferred_element_type=jnp.float32) + eb2[...]
    z = jnp.dot(z.astype(jnp.bfloat16), ew3[...],
                preferred_element_type=jnp.float32) + eb3[...]

    # ---------------- l2 normalize bottleneck (always applied, f32) --------
    # Padded lanes are exactly zero, so the sum of squares is unaffected.
    sq = jnp.sum(z * z, axis=-1, keepdims=True)
    z = z * jax.lax.rsqrt(jnp.maximum(sq, 1e-12))

    # ---------------- decoder ----------------------------------------------
    z = jnp.dot(z.astype(jnp.bfloat16), dw1[...],
                preferred_element_type=jnp.float32) + db1[...]
    z = jnp.dot(z.astype(jnp.bfloat16), dw2[...],
                preferred_element_type=jnp.float32) + db2[...]
    z = jnp.dot(z.astype(jnp.bfloat16), dw3[...],
                preferred_element_type=jnp.float32) + db3[...]

    o_ref[...] = z.astype(o_ref.dtype)


# --------------------------------------------------------------------------
# Parameter prep: pad feature dims to 128 multiples, cast weights to bf16.
# --------------------------------------------------------------------------
def prepare_params(params, cfg):
    """params: 12 arrays [w1,b1,...,w6,b6]; w_i is (in, out) f32, b_i (1, out).
    Returns lane-padded bf16 weights / f32 biases and the padded dim chain."""
    dims = cfg + cfg[::-1][1:]            # [in, h1, h2, out, h2, h1, in]
    pdims = [_round_up(d, LANE) for d in dims]

    padded = []
    for li in range(6):
        w = params[2 * li]
        b = params[2 * li + 1].reshape(1, -1)
        din, dout = w.shape
        pin, pout = pdims[li], pdims[li + 1]
        w_p = jnp.pad(w.astype(jnp.bfloat16), ((0, pin - din), (0, pout - dout)))
        b_p = jnp.pad(b.astype(jnp.float32), ((0, 0), (0, pout - dout)))
        padded += [w_p, b_p]
    return padded, pdims


# --------------------------------------------------------------------------
# Wrapper
# --------------------------------------------------------------------------
def autoencoder_forward(x, padded_params, pdims, max_tb=512, out_dtype=jnp.float32):
    batch, in_dim = x.shape
    in_pad = pdims[0]
    x = x.astype(jnp.float32)

    # Pad batch only to a multiple of 8 (sublane); partial last grid tile is
    # handled by Pallas bounds clipping (rows are independent).
    batch_pad = _round_up(batch, 8)
    tb = _choose_batch_tile(batch_pad, max_tb)
    grid = (pl.cdiv(batch_pad, tb),)

    x_p = jnp.pad(x, ((0, batch_pad - batch), (0, in_pad - in_dim)))

    # x / out tiled over batch; weights+biases VMEM-resident (constant index).
    x_spec = pl.BlockSpec((tb, in_pad), lambda i: (i, 0))
    o_spec = pl.BlockSpec((tb, in_pad), lambda i: (i, 0))
    w_specs = [pl.BlockSpec(p.shape, lambda i: (0, 0)) for p in padded_params]

    # Cost estimate (advisory).
    rows = int(grid[0]) * tb
    flops = 2 * rows * sum(pdims[i] * pdims[i + 1] for i in range(6))
    param_bytes = sum(int(p.size) * p.dtype.itemsize for p in padded_params)
    bytes_accessed = (batch_pad * in_pad * 4        # f32 input read
                      + param_bytes                 # resident weights
                      + batch_pad * in_pad * 2)     # bf16 output write

    # VMEM budget: Pallas double-buffers even constant-index blocks, so count
    # 2x params; plus double-buffered f32 input / bf16 output tiles and f32
    # live-intermediate headroom. Clamp to the generation-aware cap.
    max_pad = max(pdims)
    vmem_est = (2 * param_bytes
                + 2 * tb * in_pad * 4      # 2x input buffers (f32)
                + 2 * tb * in_pad * 2      # 2x output buffers (bf16)
                + 4 * tb * max_pad * 4)    # f32 intermediate headroom
    cap = _vmem_cap_bytes()
    vmem_limit = int(min(cap, max(32 * 1024 * 1024, 2 * vmem_est)))

    out = pl.pallas_call(
        autoencoder_kernel,
        out_shape=jax.ShapeDtypeStruct((batch_pad, in_pad), jnp.bfloat16),
        grid=grid,
        in_specs=[x_spec] + w_specs,
        out_specs=o_spec,
        compiler_params=pltpu.CompilerParams(
            dimension_semantics=("parallel",),     # megacore split on v7x
            vmem_limit_bytes=vmem_limit,
        ),
        cost_estimate=pl.CostEstimate(
            flops=int(flops),
            transcendentals=int(rows),             # one rsqrt per row
            bytes_accessed=int(bytes_accessed),
        ),
    )(x_p, *padded_params)

    # Slice padding off; upcast the (small) result only if the caller wants f32.
    return out[:batch, :in_dim].astype(out_dtype)


# --------------------------------------------------------------------------
# Init + reference
# --------------------------------------------------------------------------
def init_params(key, input_dim, output_dim, hidden_dims):
    """N(0,1) init for every weight/bias (nn.init.normal_(std=1.0)).
    Weights returned already transposed to (in, out); biases as (1, out)."""
    cfg = [input_dim] + hidden_dims + [output_dim]
    enc_dims = list(zip(cfg[:-1], cfg[1:]))
    rcfg = cfg[::-1]
    dec_dims = list(zip(rcfg[:-1], rcfg[1:]))

    params = []
    for (d_in, d_out) in enc_dims + dec_dims:
        key, kw, kb = jax.random.split(key, 3)
        params.append(jax.random.normal(kw, (d_in, d_out), dtype=jnp.float32))
        params.append(jax.random.normal(kb, (1, d_out), dtype=jnp.float32))
    return params, cfg


def reference_forward(x, padded_params, pdims):
    """Pure-JAX reference mirroring the kernel math exactly
    (f32 input, bf16 matmul operands, f32 accumulation, bf16 output)."""
    batch, in_dim = x.shape
    in_pad = pdims[0]
    z = jnp.pad(x.astype(jnp.float32), ((0, 0), (0, in_pad - in_dim)))
    for i in range(3):
        w, b = padded_params[2 * i], padded_params[2 * i + 1]
        z = jnp.dot(z.astype(jnp.bfloat16), w,
                    preferred_element_type=jnp.float32) + b
    sq = jnp.sum(z * z, axis=-1, keepdims=True)
    z = z * jax.lax.rsqrt(jnp.maximum(sq, 1e-12))
    for i in range(3, 6):
        w, b = padded_params[2 * i], padded_params[2 * i + 1]
        z = jnp.dot(z.astype(jnp.bfloat16), w,
                    preferred_element_type=jnp.float32) + b
    return z[:batch, :in_dim].astype(jnp.bfloat16).astype(jnp.float32)


# --------------------------------------------------------------------------
if __name__ == "__main__":
    key = jax.random.PRNGKey(0)
    batch = 8
    input_dim = 32
    hidden_dims = [64, 32]   # small stand-in for default [1024, 512]
    output_dim = 16

    key, kx = jax.random.split(key)
    x = jax.random.normal(kx, (batch, input_dim), dtype=jnp.float32)

    params, cfg = init_params(key, input_dim, output_dim, hidden_dims)
    padded_params, pdims = prepare_params(params, cfg)

    out = autoencoder_forward(x, padded_params, pdims)
    out = jax.block_until_ready(out)
    assert out.shape == (batch, input_dim), out.shape

    ref = reference_forward(x, padded_params, pdims)
    assert jnp.allclose(out, ref, rtol=2e-2, atol=2e-1), "mismatch vs reference"
    print("KERNEL_OK")
</pallas_src>

<mosaic_0001>
module attributes {stable_mosaic.version = 11 : i64} {
  func.func @autoencoder_kernel(%arg0: i32, %arg1: memref<8x128xf32, #tpu.memory_space<vmem>>, %arg2: memref<128x128xbf16, #tpu.memory_space<vmem>>, %arg3: memref<1x128xf32, #tpu.memory_space<vmem>>, %arg4: memref<128x128xbf16, #tpu.memory_space<vmem>>, %arg5: memref<1x128xf32, #tpu.memory_space<vmem>>, %arg6: memref<128x128xbf16, #tpu.memory_space<vmem>>, %arg7: memref<1x128xf32, #tpu.memory_space<vmem>>, %arg8: memref<128x128xbf16, #tpu.memory_space<vmem>>, %arg9: memref<1x128xf32, #tpu.memory_space<vmem>>, %arg10: memref<128x128xbf16, #tpu.memory_space<vmem>>, %arg11: memref<1x128xf32, #tpu.memory_space<vmem>>, %arg12: memref<128x128xbf16, #tpu.memory_space<vmem>>, %arg13: memref<1x128xf32, #tpu.memory_space<vmem>>, %arg14: memref<8x128xbf16, #tpu.memory_space<vmem>>) attributes {dimension_semantics = [#tpu.dimension_semantics<parallel>], iteration_bounds = array<i64: 1>, scalar_prefetch = 0 : i64, scratch_operands = 0 : i64, tpu.core_type = #tpu.core_type<tc>, window_params = [{transform_indices = @transform_0, window_bounds = array<i64: 8, 128>}, {pipeline_mode = #tpu.pipeline_mode<synchronous>, transform_indices = @transform_1, window_bounds = array<i64: 128, 128>}, {pipeline_mode = #tpu.pipeline_mode<synchronous>, transform_indices = @transform_2, window_bounds = array<i64: 1, 128>}, {pipeline_mode = #tpu.pipeline_mode<synchronous>, transform_indices = @transform_3, window_bounds = array<i64: 128, 128>}, {pipeline_mode = #tpu.pipeline_mode<synchronous>, transform_indices = @transform_4, window_bounds = array<i64: 1, 128>}, {pipeline_mode = #tpu.pipeline_mode<synchronous>, transform_indices = @transform_5, window_bounds = array<i64: 128, 128>}, {pipeline_mode = #tpu.pipeline_mode<synchronous>, transform_indices = @transform_6, window_bounds = array<i64: 1, 128>}, {pipeline_mode = #tpu.pipeline_mode<synchronous>, transform_indices = @transform_7, window_bounds = array<i64: 128, 128>}, {pipeline_mode = #tpu.pipeline_mode<synchronous>, transform_indices = @transform_8, window_bounds = array<i64: 1, 128>}, {pipeline_mode = #tpu.pipeline_mode<synchronous>, transform_indices = @transform_9, window_bounds = array<i64: 128, 128>}, {pipeline_mode = #tpu.pipeline_mode<synchronous>, transform_indices = @transform_10, window_bounds = array<i64: 1, 128>}, {pipeline_mode = #tpu.pipeline_mode<synchronous>, transform_indices = @transform_11, window_bounds = array<i64: 128, 128>}, {pipeline_mode = #tpu.pipeline_mode<synchronous>, transform_indices = @transform_12, window_bounds = array<i64: 1, 128>}, {transform_indices = @transform_13, window_bounds = array<i64: 8, 128>}]} {
    %c0 = arith.constant 0 : index
    %c0_0 = arith.constant 0 : index
    %0 = vector.load %arg1[%c0, %c0_0] : memref<8x128xf32, #tpu.memory_space<vmem>>, vector<8x128xf32>
    %1 = arith.truncf %0 : vector<8x128xf32> to vector<8x128xbf16>
    %c0_1 = arith.constant 0 : index
    %c0_2 = arith.constant 0 : index
    %2 = vector.load %arg2[%c0_1, %c0_2] : memref<128x128xbf16, #tpu.memory_space<vmem>>, vector<128x128xbf16>
    %cst = arith.constant dense<0.000000e+00> : vector<8x128xf32>
    %3 = tpu.matmul %1, %2, %cst {dimension_numbers = #tpu.dot_dimension_numbers<[1], [0], [0], [1], [0, 0, 1, 1], [], []>} : vector<8x128xbf16>, vector<128x128xbf16>, vector<8x128xf32> -> vector<8x128xf32>
    %c0_3 = arith.constant 0 : index
    %c0_4 = arith.constant 0 : index
    %4 = vector.load %arg3[%c0_3, %c0_4] : memref<1x128xf32, #tpu.memory_space<vmem>>, vector<1x128xf32>
    %5 = vector.broadcast %4 : vector<1x128xf32> to vector<8x128xf32>
    %6 = arith.addf %3, %5 : vector<8x128xf32>
    %7 = arith.truncf %6 : vector<8x128xf32> to vector<8x128xbf16>
    %c0_5 = arith.constant 0 : index
    %c0_6 = arith.constant 0 : index
    %8 = vector.load %arg4[%c0_5, %c0_6] : memref<128x128xbf16, #tpu.memory_space<vmem>>, vector<128x128xbf16>
    %cst_7 = arith.constant dense<0.000000e+00> : vector<8x128xf32>
    %9 = tpu.matmul %7, %8, %cst_7 {dimension_numbers = #tpu.dot_dimension_numbers<[1], [0], [0], [1], [0, 0, 1, 1], [], []>} : vector<8x128xbf16>, vector<128x128xbf16>, vector<8x128xf32> -> vector<8x128xf32>
    %c0_8 = arith.constant 0 : index
    %c0_9 = arith.constant 0 : index
    %10 = vector.load %arg5[%c0_8, %c0_9] : memref<1x128xf32, #tpu.memory_space<vmem>>, vector<1x128xf32>
    %11 = vector.broadcast %10 : vector<1x128xf32> to vector<8x128xf32>
    %12 = arith.addf %9, %11 : vector<8x128xf32>
    %13 = arith.truncf %12 : vector<8x128xf32> to vector<8x128xbf16>
    %c0_10 = arith.constant 0 : index
    %c0_11 = arith.constant 0 : index
    %14 = vector.load %arg6[%c0_10, %c0_11] : memref<128x128xbf16, #tpu.memory_space<vmem>>, vector<128x128xbf16>
    %cst_12 = arith.constant dense<0.000000e+00> : vector<8x128xf32>
    %15 = tpu.matmul %13, %14, %cst_12 {dimension_numbers = #tpu.dot_dimension_numbers<[1], [0], [0], [1], [0, 0, 1, 1], [], []>} : vector<8x128xbf16>, vector<128x128xbf16>, vector<8x128xf32> -> vector<8x128xf32>
    %c0_13 = arith.constant 0 : index
    %c0_14 = arith.constant 0 : index
    %16 = vector.load %arg7[%c0_13, %c0_14] : memref<1x128xf32, #tpu.memory_space<vmem>>, vector<1x128xf32>
    %17 = vector.broadcast %16 : vector<1x128xf32> to vector<8x128xf32>
    %18 = arith.addf %15, %17 : vector<8x128xf32>
    %19 = arith.mulf %18, %18 : vector<8x128xf32>
    %cst_15 = arith.constant dense<0.000000e+00> : vector<8xf32>
    %20 = vector.multi_reduction <add>, %19, %cst_15 [1] : vector<8x128xf32> to vector<8xf32>
    %21 = vector.shape_cast %20 : vector<8xf32> to vector<8x1xf32>
    %cst_16 = arith.constant 9.99999996E-13 : f32
    %22 = vector.broadcast %cst_16 : f32 to vector<8x1xf32>
    %23 = arith.maximumf %21, %22 : vector<8x1xf32>
    %24 = math.rsqrt %23 : vector<8x1xf32>
    %25 = vector.broadcast %24 : vector<8x1xf32> to vector<8x128xf32>
    %26 = arith.mulf %18, %25 : vector<8x128xf32>
    %27 = arith.truncf %26 : vector<8x128xf32> to vector<8x128xbf16>
    %c0_17 = arith.constant 0 : index
    %c0_18 = arith.constant 0 : index
    %28 = vector.load %arg8[%c0_17, %c0_18] : memref<128x128xbf16, #tpu.memory_space<vmem>>, vector<128x128xbf16>
    %cst_19 = arith.constant dense<0.000000e+00> : vector<8x128xf32>
    %29 = tpu.matmul %27, %28, %cst_19 {dimension_numbers = #tpu.dot_dimension_numbers<[1], [0], [0], [1], [0, 0, 1, 1], [], []>} : vector<8x128xbf16>, vector<128x128xbf16>, vector<8x128xf32> -> vector<8x128xf32>
    %c0_20 = arith.constant 0 : index
    %c0_21 = arith.constant 0 : index
    %30 = vector.load %arg9[%c0_20, %c0_21] : memref<1x128xf32, #tpu.memory_space<vmem>>, vector<1x128xf32>
    %31 = vector.broadcast %30 : vector<1x128xf32> to vector<8x128xf32>
    %32 = arith.addf %29, %31 : vector<8x128xf32>
    %33 = arith.truncf %32 : vector<8x128xf32> to vector<8x128xbf16>
    %c0_22 = arith.constant 0 : index
    %c0_23 = arith.constant 0 : index
    %34 = vector.load %arg10[%c0_22, %c0_23] : memref<128x128xbf16, #tpu.memory_space<vmem>>, vector<128x128xbf16>
    %cst_24 = arith.constant dense<0.000000e+00> : vector<8x128xf32>
    %35 = tpu.matmul %33, %34, %cst_24 {dimension_numbers = #tpu.dot_dimension_numbers<[1], [0], [0], [1], [0, 0, 1, 1], [], []>} : vector<8x128xbf16>, vector<128x128xbf16>, vector<8x128xf32> -> vector<8x128xf32>
    %c0_25 = arith.constant 0 : index
    %c0_26 = arith.constant 0 : index
    %36 = vector.load %arg11[%c0_25, %c0_26] : memref<1x128xf32, #tpu.memory_space<vmem>>, vector<1x128xf32>
    %37 = vector.broadcast %36 : vector<1x128xf32> to vector<8x128xf32>
    %38 = arith.addf %35, %37 : vector<8x128xf32>
    %39 = arith.truncf %38 : vector<8x128xf32> to vector<8x128xbf16>
    %c0_27 = arith.constant 0 : index
    %c0_28 = arith.constant 0 : index
    %40 = vector.load %arg12[%c0_27, %c0_28] : memref<128x128xbf16, #tpu.memory_space<vmem>>, vector<128x128xbf16>
    %cst_29 = arith.constant dense<0.000000e+00> : vector<8x128xf32>
    %41 = tpu.matmul %39, %40, %cst_29 {dimension_numbers = #tpu.dot_dimension_numbers<[1], [0], [0], [1], [0, 0, 1, 1], [], []>} : vector<8x128xbf16>, vector<128x128xbf16>, vector<8x128xf32> -> vector<8x128xf32>
    %c0_30 = arith.constant 0 : index
    %c0_31 = arith.constant 0 : index
    %42 = vector.load %arg13[%c0_30, %c0_31] : memref<1x128xf32, #tpu.memory_space<vmem>>, vector<1x128xf32>
    %43 = vector.broadcast %42 : vector<1x128xf32> to vector<8x128xf32>
    %44 = arith.addf %41, %43 : vector<8x128xf32>
    %45 = arith.truncf %44 : vector<8x128xf32> to vector<8x128xbf16>
    %c0_32 = arith.constant 0 : index
    %c0_33 = arith.constant 0 : index
    %46 = vector.load %arg14[%c0_32, %c0_33] : memref<8x128xbf16, #tpu.memory_space<vmem>>, vector<8x128xbf16>
    tpu.vector_store %arg14[%c0_32, %c0_33], %45 {strides = array<i32>} : memref<8x128xbf16, #tpu.memory_space<vmem>>, vector<8x128xbf16>,
    return
  }
  func.func @transform_0(%arg0: i32) -> (i32, i32) {
    %c0_i32 = arith.constant 0 : i32
    %c0_i32_0 = arith.constant 0 : i32
    return %arg0, %c0_i32 : i32, i32
  }
  func.func @transform_1(%arg0: i32) -> (i32, i32) {
    %c0_i32 = arith.constant 0 : i32
    %c0_i32_0 = arith.constant 0 : i32
    %c0_i32_1 = arith.constant 0 : i32
    return %c0_i32, %c0_i32_0 : i32, i32
  }
  func.func @transform_2(%arg0: i32) -> (i32, i32) {
    %c0_i32 = arith.constant 0 : i32
    %c0_i32_0 = arith.constant 0 : i32
    %c0_i32_1 = arith.constant 0 : i32
    return %c0_i32, %c0_i32_0 : i32, i32
  }
  func.func @transform_3(%arg0: i32) -> (i32, i32) {
    %c0_i32 = arith.constant 0 : i32
    %c0_i32_0 = arith.constant 0 : i32
    %c0_i32_1 = arith.constant 0 : i32
    return %c0_i32, %c0_i32_0 : i32, i32
  }
  func.func @transform_4(%arg0: i32) -> (i32, i32) {
    %c0_i32 = arith.constant 0 : i32
    %c0_i32_0 = arith.constant 0 : i32
    %c0_i32_1 = arith.constant 0 : i32
    return %c0_i32, %c0_i32_0 : i32, i32
  }
  func.func @transform_5(%arg0: i32) -> (i32, i32) {
    %c0_i32 = arith.constant 0 : i32
    %c0_i32_0 = arith.constant 0 : i32
    %c0_i32_1 = arith.constant 0 : i32
    return %c0_i32, %c0_i32_0 : i32, i32
  }
  func.func @transform_6(%arg0: i32) -> (i32, i32) {
    %c0_i32 = arith.constant 0 : i32
    %c0_i32_0 = arith.constant 0 : i32
    %c0_i32_1 = arith.constant 0 : i32
    return %c0_i32, %c0_i32_0 : i32, i32
  }
  func.func @transform_7(%arg0: i32) -> (i32, i32) {
    %c0_i32 = arith.constant 0 : i32
    %c0_i32_0 = arith.constant 0 : i32
    %c0_i32_1 = arith.constant 0 : i32
    return %c0_i32, %c0_i32_0 : i32, i32
  }
  func.func @transform_8(%arg0: i32) -> (i32, i32) {
    %c0_i32 = arith.constant 0 : i32
    %c0_i32_0 = arith.constant 0 : i32
    %c0_i32_1 = arith.constant 0 : i32
    return %c0_i32, %c0_i32_0 : i32, i32
  }
  func.func @transform_9(%arg0: i32) -> (i32, i32) {
    %c0_i32 = arith.constant 0 : i32
    %c0_i32_0 = arith.constant 0 : i32
    %c0_i32_1 = arith.constant 0 : i32
    return %c0_i32, %c0_i32_0 : i32, i32
  }
  func.func @transform_10(%arg0: i32) -> (i32, i32) {
    %c0_i32 = arith.constant 0 : i32
    %c0_i32_0 = arith.constant 0 : i32
    %c0_i32_1 = arith.constant 0 : i32
    return %c0_i32, %c0_i32_0 : i32, i32
  }
  func.func @transform_11(%arg0: i32) -> (i32, i32) {
    %c0_i32 = arith.constant 0 : i32
    %c0_i32_0 = arith.constant 0 : i32
    %c0_i32_1 = arith.constant 0 : i32
    return %c0_i32, %c0_i32_0 : i32, i32
  }
  func.func @transform_12(%arg0: i32) -> (i32, i32) {
    %c0_i32 = arith.constant 0 : i32
    %c0_i32_0 = arith.constant 0 : i32
    %c0_i32_1 = arith.constant 0 : i32
    return %c0_i32, %c0_i32_0 : i32, i32
  }
  func.func @transform_13(%arg0: i32) -> (i32, i32) {
    %c0_i32 = arith.constant 0 : i32
    %c0_i32_0 = arith.constant 0 : i32
    return %arg0, %c0_i32 : i32, i32
  }
}

</mosaic_0001>

<llo_original>
// kernel: tpu_custom_call.1
$region0: #{tpu_custom_call.1}
  #allocation0 [shape = 'u32[]', space=smem, size = 0x4, offset = 0x4, fixed_abs, tag = 'smem constant byte address 0x4 - core index']
  #allocation1 [shape = 'u32[72,128]{1,0:T(1,128)}', space=vmem, size = 0x9000, scoped, tag = 'internal scratch']
  %s0 = inlined_call_operand.hbm [shape: f32[8,128], index: 0, kind: input, shape index: {}]
  %s1 = inlined_call_operand.hbm [shape: bf16[128,128], index: 1, kind: input, shape index: {}]
  %s2 = inlined_call_operand.vmem [shape: f32[1,128], index: 2, kind: input, shape index: {}]
  %s3 = inlined_call_operand.hbm [shape: bf16[128,128], index: 3, kind: input, shape index: {}]
  %s4 = inlined_call_operand.vmem [shape: f32[1,128], index: 4, kind: input, shape index: {}]
  %s5 = inlined_call_operand.hbm [shape: bf16[128,128], index: 5, kind: input, shape index: {}]
  %s6 = inlined_call_operand.vmem [shape: f32[1,128], index: 6, kind: input, shape index: {}]
  %s7 = inlined_call_operand.hbm [shape: bf16[128,128], index: 7, kind: input, shape index: {}]
  %s8 = inlined_call_operand.vmem [shape: f32[1,128], index: 8, kind: input, shape index: {}]
  %s9 = inlined_call_operand.hbm [shape: bf16[128,128], index: 9, kind: input, shape index: {}]
  %s10 = inlined_call_operand.vmem [shape: f32[1,128], index: 10, kind: input, shape index: {}]
  %s11 = inlined_call_operand.hbm [shape: bf16[128,128], index: 11, kind: input, shape index: {}]
  %s12 = inlined_call_operand.vmem [shape: f32[1,128], index: 12, kind: input, shape index: {}]
  %s13 = inlined_call_operand.hbm [shape: bf16[8,128], index: 13, kind: output, shape index: {}]
  %s14 = sld [smem:[#allocation0]]
  $region90: #{tpu_custom_call.1} parent=0
    _
  %s16 = ssub.s32 1, %s14
  %s17 = scalar_select 0, %s16, %s14
  $region1: #{tpu_custom_call.1} parent=0
    #allocation2 [shape = 'u8[4096]{0}', space=vmem, size = 0x1000, scoped, tag = 'input window, operand 0, single buffered']
    #allocation3 [shape = 's32[1]{0}', space=sflag, size = 0x4, scoped, tag = 'scoped memory for tpu_custom_call.1']
    #allocation4 [shape = 's32[1]{0}', space=sflag, size = 0x4, scoped, tag = 'scoped memory for tpu_custom_call.1']
    #allocation5 [shape = 'u8[32768]{0}', space=vmem, size = 0x8000, scoped, tag = 'input window, operand 1, single buffered']
    #allocation6 [shape = 's32[1]{0}', space=sflag, size = 0x4, scoped, tag = 'scoped memory for tpu_custom_call.1']
    #allocation7 [shape = 'u8[32768]{0}', space=vmem, size = 0x8000, scoped, tag = 'input window, operand 3, single buffered']
    #allocation8 [shape = 'u8[32768]{0}', space=vmem, size = 0x8000, scoped, tag = 'input window, operand 5, single buffered']
    #allocation9 [shape = 's32[1]{0}', space=sflag, size = 0x4, scoped, tag = 'scoped memory for tpu_custom_call.1']
    #allocation10 [shape = 'u8[32768]{0}', space=vmem, size = 0x8000, scoped, tag = 'input window, operand 7, single buffered']
    #allocation11 [shape = 'u8[32768]{0}', space=vmem, size = 0x8000, scoped, tag = 'input window, operand 9, single buffered']
    #allocation12 [shape = 's32[1]{0}', space=sflag, size = 0x4, scoped, tag = 'scoped memory for tpu_custom_call.1']
    #allocation13 [shape = 'u8[32768]{0}', space=vmem, size = 0x8000, scoped, tag = 'input window, operand 11, single buffered']
    #allocation14 [shape = 'u8[2048]{0}', space=vmem, size = 0x800, scoped, tag = 'output window, operand 0, single buffered']
    %18 = vsyncpa [#allocation3], 0
    %19 = vsyncpa [#allocation6], 0
    %20 = vsyncpa [#allocation9], 0
    %21 = vsyncpa [#allocation12], 0
    %22 = vsyncpa [#allocation4], 0
    // Predicated region
    $region2: #{tpu_custom_call.1} parent=1 // pred_check
      _
    $region3: #{tpu_custom_call.1} parent=1 // pred_check_branch
      %24 = sbr.rel (0) target = $region5
    $region4: #{tpu_custom_call.1} parent=1 // pred_region
      %26 = vsyncadd [#allocation3], 0
      %s28 = sshll.u32 %s0, 4
      %s29 = int_to_ptr.hbm [resolvable:$true] %s28
      %s30 = sshll.u32 [#allocation2], 4
      %s31 = int_to_ptr.vmem [resolvable:$true] %s30
      %33 = dma.hbm_to_vmem [thread:$0]  %s29, 128, %s31, [#allocation3]
    $region5: #{tpu_custom_call.1} parent=1 // pred_fallthru
      _
    // Predicated region
    $region6: #{tpu_custom_call.1} parent=1 // pred_check
      _
    $region7: #{tpu_custom_call.1} parent=1 // pred_check_branch
      %35 = sbr.rel (0) target = $region9
    $region8: #{tpu_custom_call.1} parent=1 // pred_region
      %37 = vsyncadd [#allocation6], 0
      %s38 = sshll.u32 %s1, 4
      %s39 = int_to_ptr.hbm [resolvable:$true] %s38
      %s40 = sshll.u32 [#allocation5], 4
      %s41 = int_to_ptr.vmem [resolvable:$true] %s40
      %46 = dma.hbm_to_vmem [thread:$0]  %s39, 1024, %s41, [#allocation6], 64, 64, 4
    $region9: #{tpu_custom_call.1} parent=1 // pred_fallthru
      _
    // Predicated region
    $region10: #{tpu_custom_call.1} parent=1 // pred_check
      _
    $region11: #{tpu_custom_call.1} parent=1 // pred_check_branch
      %48 = sbr.rel (0) target = $region13
    $region12: #{tpu_custom_call.1} parent=1 // pred_region
      _
    $region13: #{tpu_custom_call.1} parent=1 // pred_fallthru
      _
    // Predicated region
    $region14: #{tpu_custom_call.1} parent=1 // pred_check
      _
    $region15: #{tpu_custom_call.1} parent=1 // pred_check_branch
      %50 = sbr.rel (0) target = $region17
    $region16: #{tpu_custom_call.1} parent=1 // pred_region
      %52 = vsyncadd [#allocation6], 0
      %s53 = sshll.u32 %s3, 4
      %s54 = int_to_ptr.hbm [resolvable:$true] %s53
      %s55 = sshll.u32 [#allocation7], 4
      %s56 = int_to_ptr.vmem [resolvable:$true] %s55
      %61 = dma.hbm_to_vmem [thread:$0]  %s54, 1024, %s56, [#allocation6], 64, 64, 4
    $region17: #{tpu_custom_call.1} parent=1 // pred_fallthru
      _
    // Predicated region
    $region18: #{tpu_custom_call.1} parent=1 // pred_check
      _
    $region19: #{tpu_custom_call.1} parent=1 // pred_check_branch
      %63 = sbr.rel (0) target = $region21
    $region20: #{tpu_custom_call.1} parent=1 // pred_region
      _
    $region21: #{tpu_custom_call.1} parent=1 // pred_fallthru
      _
    // Predicated region
    $region22: #{tpu_custom_call.1} parent=1 // pred_check
      _
    $region23: #{tpu_custom_call.1} parent=1 // pred_check_branch
      %65 = sbr.rel (0) target = $region25
    $region24: #{tpu_custom_call.1} parent=1 // pred_region
      %67 = vsyncadd [#allocation9], 0
      %s68 = sshll.u32 %s5, 4
      %s69 = int_to_ptr.hbm [resolvable:$true] %s68
      %s70 = sshll.u32 [#allocation8], 4
      %s71 = int_to_ptr.vmem [resolvable:$true] %s70
      %76 = dma.hbm_to_vmem [thread:$0]  %s69, 1024, %s71, [#allocation9], 64, 64, 4
    $region25: #{tpu_custom_call.1} parent=1 // pred_fallthru
      _
    // Predicated region
    $region26: #{tpu_custom_call.1} parent=1 // pred_check
      _
    $region27: #{tpu_custom_call.1} parent=1 // pred_check_branch
      %78 = sbr.rel (0) target = $region29
    $region28: #{tpu_custom_call.1} parent=1 // pred_region
      _
    $region29: #{tpu_custom_call.1} parent=1 // pred_fallthru
      _
    // Predicated region
    $region30: #{tpu_custom_call.1} parent=1 // pred_check
      _
    $region31: #{tpu_custom_call.1} parent=1 // pred_check_branch
      %80 = sbr.rel (0) target = $region33
    $region32: #{tpu_custom_call.1} parent=1 // pred_region
      %82 = vsyncadd [#allocation9], 0
      %s83 = sshll.u32 %s7, 4
      %s84 = int_to_ptr.hbm [resolvable:$true] %s83
      %s85 = sshll.u32 [#allocation10], 4
      %s86 = int_to_ptr.vmem [resolvable:$true] %s85
      %91 = dma.hbm_to_vmem [thread:$0]  %s84, 1024, %s86, [#allocation9], 64, 64, 4
    $region33: #{tpu_custom_call.1} parent=1 // pred_fallthru
      _
    // Predicated region
    $region34: #{tpu_custom_call.1} parent=1 // pred_check
      _
    $region35: #{tpu_custom_call.1} parent=1 // pred_check_branch
      %93 = sbr.rel (0) target = $region37
    $region36: #{tpu_custom_call.1} parent=1 // pred_region
      _
    $region37: #{tpu_custom_call.1} parent=1 // pred_fallthru
      _
    // Predicated region
    $region38: #{tpu_custom_call.1} parent=1 // pred_check
      _
    $region39: #{tpu_custom_call.1} parent=1 // pred_check_branch
      %95 = sbr.rel (0) target = $region41
    $region40: #{tpu_custom_call.1} parent=1 // pred_region
      %97 = vsyncadd [#allocation12], 0
      %s98 = sshll.u32 %s9, 4
      %s99 = int_to_ptr.hbm [resolvable:$true] %s98
      %s100 = sshll.u32 [#allocation11], 4
      %s101 = int_to_ptr.vmem [resolvable:$true] %s100
      %106 = dma.hbm_to_vmem [thread:$0]  %s99, 1024, %s101, [#allocation12], 64, 64, 4
    $region41: #{tpu_custom_call.1} parent=1 // pred_fallthru
      _
    // Predicated region
    $region42: #{tpu_custom_call.1} parent=1 // pred_check
      _
    $region43: #{tpu_custom_call.1} parent=1 // pred_check_branch
      %108 = sbr.rel (0) target = $region45
    $region44: #{tpu_custom_call.1} parent=1 // pred_region
      _
    $region45: #{tpu_custom_call.1} parent=1 // pred_fallthru
      _
    // Predicated region
    $region46: #{tpu_custom_call.1} parent=1 // pred_check
      _
    $region47: #{tpu_custom_call.1} parent=1 // pred_check_branch
      %110 = sbr.rel (0) target = $region49
    $region48: #{tpu_custom_call.1} parent=1 // pred_region
      %112 = vsyncadd [#allocation12], 0
      %s113 = sshll.u32 %s11, 4
      %s114 = int_to_ptr.hbm [resolvable:$true] %s113
      %s115 = sshll.u32 [#allocation13], 4
      %s116 = int_to_ptr.vmem [resolvable:$true] %s115
      %121 = dma.hbm_to_vmem [thread:$0]  %s114, 1024, %s116, [#allocation12], 64, 64, 4
    $region49: #{tpu_custom_call.1} parent=1 // pred_fallthru
      _
    // Predicated region
    $region50: #{tpu_custom_call.1} parent=1 // pred_check
      _
    $region51: #{tpu_custom_call.1} parent=1 // pred_check_branch
      %123 = sbr.rel (0) target = $region53
    $region52: #{tpu_custom_call.1} parent=1 // pred_region
      _
    $region53: #{tpu_custom_call.1} parent=1 // pred_fallthru
      _
    // Predicated region
    $region54: #{tpu_custom_call.1} parent=1 // pred_check
      _
    $region55: #{tpu_custom_call.1} parent=1 // pred_check_branch
      %125 = sbr.rel (0) target = $region57
    $region56: #{tpu_custom_call.1} parent=1 // pred_region
      %127 = dma.done [#allocation3], 128
    $region57: #{tpu_custom_call.1} parent=1 // pred_fallthru
      _
    // Predicated region
    $region58: #{tpu_custom_call.1} parent=1 // pred_check
      _
    $region59: #{tpu_custom_call.1} parent=1 // pred_check_branch
      %129 = sbr.rel (0) target = $region61
    $region60: #{tpu_custom_call.1} parent=1 // pred_region
      %131 = dma.done [#allocation6], 1024
    $region61: #{tpu_custom_call.1} parent=1 // pred_fallthru
      _
    // Predicated region
    $region62: #{tpu_custom_call.1} parent=1 // pred_check
      _
    $region63: #{tpu_custom_call.1} parent=1 // pred_check_branch
      %133 = sbr.rel (0) target = $region65
    $region64: #{tpu_custom_call.1} parent=1 // pred_region
      %135 = dma.done [#allocation6], 1024
    $region65: #{tpu_custom_call.1} parent=1 // pred_fallthru
      _
    // Predicated region
    $region66: #{tpu_custom_call.1} parent=1 // pred_check
      _
    $region67: #{tpu_custom_call.1} parent=1 // pred_check_branch
      %137 = sbr.rel (0) target = $region69
    $region68: #{tpu_custom_call.1} parent=1 // pred_region
      %139 = dma.done [#allocation9], 1024
    $region69: #{tpu_custom_call.1} parent=1 // pred_fallthru
      _
    // Predicated region
    $region70: #{tpu_custom_call.1} parent=1 // pred_check
      _
    $region71: #{tpu_custom_call.1} parent=1 // pred_check_branch
      %141 = sbr.rel (0) target = $region73
    $region72: #{tpu_custom_call.1} parent=1 // pred_region
      %143 = dma.done [#allocation9], 1024
    $region73: #{tpu_custom_call.1} parent=1 // pred_fallthru
      _
    // Predicated region
    $region74: #{tpu_custom_call.1} parent=1 // pred_check
      _
    $region75: #{tpu_custom_call.1} parent=1 // pred_check_branch
      %145 = sbr.rel (0) target = $region77
    $region76: #{tpu_custom_call.1} parent=1 // pred_region
      %147 = dma.done [#allocation12], 1024
    $region77: #{tpu_custom_call.1} parent=1 // pred_fallthru
      _
    // Predicated region
    $region78: #{tpu_custom_call.1} parent=1 // pred_check
      _
    $region79: #{tpu_custom_call.1} parent=1 // pred_check_branch
      %149 = sbr.rel (0) target = $region81
    $region80: #{tpu_custom_call.1} parent=1 // pred_region
      %151 = dma.done [#allocation12], 1024
    $region81: #{tpu_custom_call.1} parent=1 // pred_fallthru
      _
    %v152 = vld [vmem:[#allocation2] sm:$0xff]
    %v153 = vpack.c.bf16 %v152, %v152
    %v154 = vld [vmem:[#allocation5] sm:$0xf]
    %v155 = vld [vmem:[#allocation5 + $0x4] sm:$0xf]
    %v156 = vld [vmem:[#allocation5 + $0x8] sm:$0xf]
    %v157 = vld [vmem:[#allocation5 + $0xc] sm:$0xf]
    %v158 = vld [vmem:[#allocation5 + $0x10] sm:$0xf]
    %v159 = vld [vmem:[#allocation5 + $0x14] sm:$0xf]
    %v160 = vld [vmem:[#allocation5 + $0x18] sm:$0xf]
    %v161 = vld [vmem:[#allocation5 + $0x1c] sm:$0xf]
    %v162 = vld [vmem:[#allocation5 + $0x20] sm:$0xf]
    %v163 = vld [vmem:[#allocation5 + $0x24] sm:$0xf]
    %v164 = vld [vmem:[#allocation5 + $0x28] sm:$0xf]
    %v165 = vld [vmem:[#allocation5 + $0x2c] sm:$0xf]
    %v166 = vld [vmem:[#allocation5 + $0x30] sm:$0xf]
    %v167 = vld [vmem:[#allocation5 + $0x34] sm:$0xf]
    %v168 = vld [vmem:[#allocation5 + $0x38] sm:$0xf]
    %v169 = vld [vmem:[#allocation5 + $0x3c] sm:$0xf]
    %v170 = vld [vmem:[%s2] sm:$0x1]
    %v172 = vperm.slane %v170, 0
    %v190 = vunpack.c.l.b16 %v154
    %v191 = vunpack.c.l.b16 %v155
    %v192 = vunpack.c.l.b16 %v156
    %v193 = vunpack.c.l.b16 %v157
    %v194 = vunpack.c.l.b16 %v158
    %v195 = vunpack.c.l.b16 %v159
    %v196 = vunpack.c.l.b16 %v160
    %v197 = vunpack.c.l.b16 %v161
    %v198 = vunpack.c.l.b16 %v162
    %v199 = vunpack.c.l.b16 %v163
    %v200 = vunpack.c.l.b16 %v164
    %v201 = vunpack.c.l.b16 %v165
    %v202 = vunpack.c.l.b16 %v166
    %v203 = vunpack.c.l.b16 %v167
    %v204 = vunpack.c.l.b16 %v168
    %v205 = vunpack.c.l.b16 %v169
    %v206 = vpack.c.b16 %v191, %v190
    %v207 = vpack.c.b16 %v193, %v192
    %v208 = vpack.c.b16 %v195, %v194
    %v209 = vpack.c.b16 %v197, %v196
    %v210 = vpack.c.b16 %v199, %v198
    %v211 = vpack.c.b16 %v201, %v200
    %v212 = vpack.c.b16 %v203, %v202
    %v213 = vpack.c.b16 %v205, %v204
    %222 = vmatpush.bf16.msra.mxu0 %v213
    %223 = vmatpush.bf16.msra.mxu0 %v212
    %224 = vmatpush.bf16.msra.mxu0 %v211
    %225 = vmatpush.bf16.msra.mxu0 %v210
    %226 = vmatpush.bf16.msra.mxu0 %v209
    %227 = vmatpush.bf16.msra.mxu0 %v208
    %228 = vmatpush.bf16.msra.mxu0 %v207
    %229 = vmatpush.bf16.msra.mxu0 %v206
    %230 = vmatmul.bf16.gmra.mxu0 %v153
    %v231 = vpop.f32.mrf.mxu0
    %v232 = vadd.f32 %v172, %v231
    %v233 = vpop.f32.mrf.mxu0
    %234 = vdwg.mxu0
    %v235 = vpack.c.bf16 %v232, %v232
    %v236 = vld [vmem:[#allocation7] sm:$0xf]
    %v237 = vld [vmem:[#allocation7 + $0x4] sm:$0xf]
    %v238 = vld [vmem:[#allocation7 + $0x8] sm:$0xf]
    %v239 = vld [vmem:[#allocation7 + $0xc] sm:$0xf]
    %v240 = vld [vmem:[#allocation7 + $0x10] sm:$0xf]
    %v241 = vld [vmem:[#allocation7 + $0x14] sm:$0xf]
    %v242 = vld [vmem:[#allocation7 + $0x18] sm:$0xf]
    %v243 = vld [vmem:[#allocation7 + $0x1c] sm:$0xf]
    %v244 = vld [vmem:[#allocation7 + $0x20] sm:$0xf]
    %v245 = vld [vmem:[#allocation7 + $0x24] sm:$0xf]
    %v246 = vld [vmem:[#allocation7 + $0x28] sm:$0xf]
    %v247 = vld [vmem:[#allocation7 + $0x2c] sm:$0xf]
    %v248 = vld [vmem:[#allocation7 + $0x30] sm:$0xf]
    %v249 = vld [vmem:[#allocation7 + $0x34] sm:$0xf]
    %v250 = vld [vmem:[#allocation7 + $0x38] sm:$0xf]
    %v251 = vld [vmem:[#allocation7 + $0x3c] sm:$0xf]
    %v252 = vld [vmem:[%s4] sm:$0x1]
    %v254 = vperm.slane %v252, 0
    %v272 = vunpack.c.l.b16 %v236
    %v273 = vunpack.c.l.b16 %v237
    %v274 = vunpack.c.l.b16 %v238
    %v275 = vunpack.c.l.b16 %v239
    %v276 = vunpack.c.l.b16 %v240
    %v277 = vunpack.c.l.b16 %v241
    %v278 = vunpack.c.l.b16 %v242
    %v279 = vunpack.c.l.b16 %v243
    %v280 = vunpack.c.l.b16 %v244
    %v281 = vunpack.c.l.b16 %v245
    %v282 = vunpack.c.l.b16 %v246
    %v283 = vunpack.c.l.b16 %v247
    %v284 = vunpack.c.l.b16 %v248
    %v285 = vunpack.c.l.b16 %v249
    %v286 = vunpack.c.l.b16 %v250
    %v287 = vunpack.c.l.b16 %v251
    %v288 = vpack.c.b16 %v273, %v272
    %v289 = vpack.c.b16 %v275, %v274
    %v290 = vpack.c.b16 %v277, %v276
    %v291 = vpack.c.b16 %v279, %v278
    %v292 = vpack.c.b16 %v281, %v280
    %v293 = vpack.c.b16 %v283, %v282
    %v294 = vpack.c.b16 %v285, %v284
    %v295 = vpack.c.b16 %v287, %v286
    %304 = vmatpush.bf16.msra.mxu0 %v295
    %305 = vmatpush.bf16.msra.mxu0 %v294
    %306 = vmatpush.bf16.msra.mxu0 %v293
    %307 = vmatpush.bf16.msra.mxu0 %v292
    %308 = vmatpush.bf16.msra.mxu0 %v291
    %309 = vmatpush.bf16.msra.mxu0 %v290
    %310 = vmatpush.bf16.msra.mxu0 %v289
    %311 = vmatpush.bf16.msra.mxu0 %v288
    %312 = vmatmul.bf16.gmra.mxu0 %v235
    %v313 = vpop.f32.mrf.mxu0
    %v314 = vadd.f32 %v254, %v313
    %v315 = vpop.f32.mrf.mxu0
    %316 = vdwg.mxu0
    %v317 = vpack.c.bf16 %v314, %v314
    %v318 = vld [vmem:[#allocation8] sm:$0xf]
    %v319 = vld [vmem:[#allocation8 + $0x4] sm:$0xf]
    %v320 = vld [vmem:[#allocation8 + $0x8] sm:$0xf]
    %v321 = vld [vmem:[#allocation8 + $0xc] sm:$0xf]
    %v322 = vld [vmem:[#allocation8 + $0x10] sm:$0xf]
    %v323 = vld [vmem:[#allocation8 + $0x14] sm:$0xf]
    %v324 = vld [vmem:[#allocation8 + $0x18] sm:$0xf]
    %v325 = vld [vmem:[#allocation8 + $0x1c] sm:$0xf]
    %v326 = vld [vmem:[#allocation8 + $0x20] sm:$0xf]
    %v327 = vld [vmem:[#allocation8 + $0x24] sm:$0xf]
    %v328 = vld [vmem:[#allocation8 + $0x28] sm:$0xf]
    %v329 = vld [vmem:[#allocation8 + $0x2c] sm:$0xf]
    %v330 = vld [vmem:[#allocation8 + $0x30] sm:$0xf]
    %v331 = vld [vmem:[#allocation8 + $0x34] sm:$0xf]
    %v332 = vld [vmem:[#allocation8 + $0x38] sm:$0xf]
    %v333 = vld [vmem:[#allocation8 + $0x3c] sm:$0xf]
    %v334 = vld [vmem:[%s6] sm:$0x1]
    %v336 = vperm.slane %v334, 0
    %v354 = vunpack.c.l.b16 %v318
    %v355 = vunpack.c.l.b16 %v319
    %v356 = vunpack.c.l.b16 %v320
    %v357 = vunpack.c.l.b16 %v321
    %v358 = vunpack.c.l.b16 %v322
    %v359 = vunpack.c.l.b16 %v323
    %v360 = vunpack.c.l.b16 %v324
    %v361 = vunpack.c.l.b16 %v325
    %v362 = vunpack.c.l.b16 %v326
    %v363 = vunpack.c.l.b16 %v327
    %v364 = vunpack.c.l.b16 %v328
    %v365 = vunpack.c.l.b16 %v329
    %v366 = vunpack.c.l.b16 %v330
    %v367 = vunpack.c.l.b16 %v331
    %v368 = vunpack.c.l.b16 %v332
    %v369 = vunpack.c.l.b16 %v333
    %v370 = vpack.c.b16 %v355, %v354
    %v371 = vpack.c.b16 %v357, %v356
    %v372 = vpack.c.b16 %v359, %v358
    %v373 = vpack.c.b16 %v361, %v360
    %v374 = vpack.c.b16 %v363, %v362
    %v375 = vpack.c.b16 %v365, %v364
    %v376 = vpack.c.b16 %v367, %v366
    %v377 = vpack.c.b16 %v369, %v368
    %386 = vmatpush.bf16.msra.mxu0 %v377
    %387 = vmatpush.bf16.msra.mxu0 %v376
    %388 = vmatpush.bf16.msra.mxu0 %v375
    %389 = vmatpush.bf16.msra.mxu0 %v374
    %390 = vmatpush.bf16.msra.mxu0 %v373
    %391 = vmatpush.bf16.msra.mxu0 %v372
    %392 = vmatpush.bf16.msra.mxu0 %v371
    %393 = vmatpush.bf16.msra.mxu0 %v370
    %394 = vmatmul.bf16.gmra.mxu0 %v317
    %v395 = vpop.f32.mrf.mxu0
    %v396 = vadd.f32 %v336, %v395
    %v397 = vpop.f32.mrf.mxu0
    %398 = vdwg.mxu0
    %v399 = vmul.f32 %v396, %v396
    %400 = vadd.xlane.f32.xlu0 %v399
    %v401 = vpop.xlane.xlu0 %400
    %v402 = vmax.f32 %v401, 1e-12
    %v403 = vrsqrt.pop %v402
    %v404 = vmul.f32 %v403, %v402
    %v405 = vmul.f32 %v404, %v403
    %v406 = vmul.f32 0.5, %v405
    %v407 = vsub.f32 1.5, %v406
    %v408 = vmul.f32 %v403, %v407
    %vm409 = vweird.f32 %v402
    %vm410 = vweird.f32 %v403
    %vm411 = vmor %vm409, %vm410
    %v412 = vsel %vm411, %v403, %v408
    %v413 = vmul.f32 %v396, %v412
    %v414 = vpack.c.bf16 %v413, %v413
    %v415 = vld [vmem:[#allocation10] sm:$0xf]
    %v416 = vld [vmem:[#allocation10 + $0x4] sm:$0xf]
    %v417 = vld [vmem:[#allocation10 + $0x8] sm:$0xf]
    %v418 = vld [vmem:[#allocation10 + $0xc] sm:$0xf]
    %v419 = vld [vmem:[#allocation10 + $0x10] sm:$0xf]
    %v420 = vld [vmem:[#allocation10 + $0x14] sm:$0xf]
    %v421 = vld [vmem:[#allocation10 + $0x18] sm:$0xf]
    %v422 = vld [vmem:[#allocation10 + $0x1c] sm:$0xf]
    %v423 = vld [vmem:[#allocation10 + $0x20] sm:$0xf]
    %v424 = vld [vmem:[#allocation10 + $0x24] sm:$0xf]
    %v425 = vld [vmem:[#allocation10 + $0x28] sm:$0xf]
    %v426 = vld [vmem:[#allocation10 + $0x2c] sm:$0xf]
    %v427 = vld [vmem:[#allocation10 + $0x30] sm:$0xf]
    %v428 = vld [vmem:[#allocation10 + $0x34] sm:$0xf]
    %v429 = vld [vmem:[#allocation10 + $0x38] sm:$0xf]
    %v430 = vld [vmem:[#allocation10 + $0x3c] sm:$0xf]
    %v431 = vld [vmem:[%s8] sm:$0x1]
    %v433 = vperm.slane %v431, 0
    %v451 = vunpack.c.l.b16 %v415
    %v452 = vunpack.c.l.b16 %v416
    %v453 = vunpack.c.l.b16 %v417
    %v454 = vunpack.c.l.b16 %v418
    %v455 = vunpack.c.l.b16 %v419
    %v456 = vunpack.c.l.b16 %v420
    %v457 = vunpack.c.l.b16 %v421
    %v458 = vunpack.c.l.b16 %v422
    %v459 = vunpack.c.l.b16 %v423
    %v460 = vunpack.c.l.b16 %v424
    %v461 = vunpack.c.l.b16 %v425
    %v462 = vunpack.c.l.b16 %v426
    %v463 = vunpack.c.l.b16 %v427
    %v464 = vunpack.c.l.b16 %v428
    %v465 = vunpack.c.l.b16 %v429
    %v466 = vunpack.c.l.b16 %v430
    %v467 = vpack.c.b16 %v452, %v451
    %v468 = vpack.c.b16 %v454, %v453
    %v469 = vpack.c.b16 %v456, %v455
    %v470 = vpack.c.b16 %v458, %v457
    %v471 = vpack.c.b16 %v460, %v459
    %v472 = vpack.c.b16 %v462, %v461
    %v473 = vpack.c.b16 %v464, %v463
    %v474 = vpack.c.b16 %v466, %v465
    %483 = vmatpush.bf16.msra.mxu0 %v474
    %484 = vmatpush.bf16.msra.mxu0 %v473
    %485 = vmatpush.bf16.msra.mxu0 %v472
    %486 = vmatpush.bf16.msra.mxu0 %v471
    %487 = vmatpush.bf16.msra.mxu0 %v470
    %488 = vmatpush.bf16.msra.mxu0 %v469
    %489 = vmatpush.bf16.msra.mxu0 %v468
    %490 = vmatpush.bf16.msra.mxu0 %v467
    %491 = vmatmul.bf16.gmra.mxu0 %v414
    %v492 = vpop.f32.mrf.mxu0
    %v493 = vadd.f32 %v433, %v492
    %v494 = vpop.f32.mrf.mxu0
    %495 = vdwg.mxu0
    %v496 = vpack.c.bf16 %v493, %v493
    %v497 = vld [vmem:[#allocation11] sm:$0xf]
    %v498 = vld [vmem:[#allocation11 + $0x4] sm:$0xf]
    %v499 = vld [vmem:[#allocation11 + $0x8] sm:$0xf]
    %v500 = vld [vmem:[#allocation11 + $0xc] sm:$0xf]
    %v501 = vld [vmem:[#allocation11 + $0x10] sm:$0xf]
    %v502 = vld [vmem:[#allocation11 + $0x14] sm:$0xf]
    %v503 = vld [vmem:[#allocation11 + $0x18] sm:$0xf]
    %v504 = vld [vmem:[#allocation11 + $0x1c] sm:$0xf]
    %v505 = vld [vmem:[#allocation11 + $0x20] sm:$0xf]
    %v506 = vld [vmem:[#allocation11 + $0x24] sm:$0xf]
    %v507 = vld [vmem:[#allocation11 + $0x28] sm:$0xf]
    %v508 = vld [vmem:[#allocation11 + $0x2c] sm:$0xf]
    %v509 = vld [vmem:[#allocation11 + $0x30] sm:$0xf]
    %v510 = vld [vmem:[#allocation11 + $0x34] sm:$0xf]
    %v511 = vld [vmem:[#allocation11 + $0x38] sm:$0xf]
    %v512 = vld [vmem:[#allocation11 + $0x3c] sm:$0xf]
    %v513 = vld [vmem:[%s10] sm:$0x1]
    %v515 = vperm.slane %v513, 0
    %v533 = vunpack.c.l.b16 %v497
    %v534 = vunpack.c.l.b16 %v498
    %v535 = vunpack.c.l.b16 %v499
    %v536 = vunpack.c.l.b16 %v500
    %v537 = vunpack.c.l.b16 %v501
    %v538 = vunpack.c.l.b16 %v502
    %v539 = vunpack.c.l.b16 %v503
    %v540 = vunpack.c.l.b16 %v504
    %v541 = vunpack.c.l.b16 %v505
    %v542 = vunpack.c.l.b16 %v506
    %v543 = vunpack.c.l.b16 %v507
    %v544 = vunpack.c.l.b16 %v508
    %v545 = vunpack.c.l.b16 %v509
    %v546 = vunpack.c.l.b16 %v510
    %v547 = vunpack.c.l.b16 %v511
    %v548 = vunpack.c.l.b16 %v512
    %v549 = vpack.c.b16 %v534, %v533
    %v550 = vpack.c.b16 %v536, %v535
    %v551 = vpack.c.b16 %v538, %v537
    %v552 = vpack.c.b16 %v540, %v539
    %v553 = vpack.c.b16 %v542, %v541
    %v554 = vpack.c.b16 %v544, %v543
    %v555 = vpack.c.b16 %v546, %v545
    %v556 = vpack.c.b16 %v548, %v547
    %565 = vmatpush.bf16.msra.mxu0 %v556
    %566 = vmatpush.bf16.msra.mxu0 %v555
    %567 = vmatpush.bf16.msra.mxu0 %v554
    %568 = vmatpush.bf16.msra.mxu0 %v553
    %569 = vmatpush.bf16.msra.mxu0 %v552
    %570 = vmatpush.bf16.msra.mxu0 %v551
    %571 = vmatpush.bf16.msra.mxu0 %v550
    %572 = vmatpush.bf16.msra.mxu0 %v549
    %573 = vmatmul.bf16.gmra.mxu0 %v496
    %v574 = vpop.f32.mrf.mxu0
    %v575 = vadd.f32 %v515, %v574
    %v576 = vpop.f32.mrf.mxu0
    %577 = vdwg.mxu0
    %v578 = vpack.c.bf16 %v575, %v575
    %v579 = vld [vmem:[#allocation13] sm:$0xf]
    %v580 = vld [vmem:[#allocation13 + $0x4] sm:$0xf]
    %v581 = vld [vmem:[#allocation13 + $0x8] sm:$0xf]
    %v582 = vld [vmem:[#allocation13 + $0xc] sm:$0xf]
    %v583 = vld [vmem:[#allocation13 + $0x10] sm:$0xf]
    %v584 = vld [vmem:[#allocation13 + $0x14] sm:$0xf]
    %v585 = vld [vmem:[#allocation13 + $0x18] sm:$0xf]
    %v586 = vld [vmem:[#allocation13 + $0x1c] sm:$0xf]
    %v587 = vld [vmem:[#allocation13 + $0x20] sm:$0xf]
    %v588 = vld [vmem:[#allocation13 + $0x24] sm:$0xf]
    %v589 = vld [vmem:[#allocation13 + $0x28] sm:$0xf]
    %v590 = vld [vmem:[#allocation13 + $0x2c] sm:$0xf]
    %v591 = vld [vmem:[#allocation13 + $0x30] sm:$0xf]
    %v592 = vld [vmem:[#allocation13 + $0x34] sm:$0xf]
    %v593 = vld [vmem:[#allocation13 + $0x38] sm:$0xf]
    %v594 = vld [vmem:[#allocation13 + $0x3c] sm:$0xf]
    %v595 = vld [vmem:[%s12] sm:$0x1]
    %v597 = vperm.slane %v595, 0
    %v615 = vunpack.c.l.b16 %v579
    %v616 = vunpack.c.l.b16 %v580
    %v617 = vunpack.c.l.b16 %v581
    %v618 = vunpack.c.l.b16 %v582
    %v619 = vunpack.c.l.b16 %v583
    %v620 = vunpack.c.l.b16 %v584
    %v621 = vunpack.c.l.b16 %v585
    %v622 = vunpack.c.l.b16 %v586
    %v623 = vunpack.c.l.b16 %v587
    %v624 = vunpack.c.l.b16 %v588
    %v625 = vunpack.c.l.b16 %v589
    %v626 = vunpack.c.l.b16 %v590
    %v627 = vunpack.c.l.b16 %v591
    %v628 = vunpack.c.l.b16 %v592
    %v629 = vunpack.c.l.b16 %v593
    %v630 = vunpack.c.l.b16 %v594
    %v631 = vpack.c.b16 %v616, %v615
    %v632 = vpack.c.b16 %v618, %v617
    %v633 = vpack.c.b16 %v620, %v619
    %v634 = vpack.c.b16 %v622, %v621
    %v635 = vpack.c.b16 %v624, %v623
    %v636 = vpack.c.b16 %v626, %v625
    %v637 = vpack.c.b16 %v628, %v627
    %v638 = vpack.c.b16 %v630, %v629
    %647 = vmatpush.bf16.msra.mxu0 %v638
    %648 = vmatpush.bf16.msra.mxu0 %v637
    %649 = vmatpush.bf16.msra.mxu0 %v636
    %650 = vmatpush.bf16.msra.mxu0 %v635
    %651 = vmatpush.bf16.msra.mxu0 %v634
    %652 = vmatpush.bf16.msra.mxu0 %v633
    %653 = vmatpush.bf16.msra.mxu0 %v632
    %654 = vmatpush.bf16.msra.mxu0 %v631
    %655 = vmatmul.bf16.gmra.mxu0 %v578
    %v656 = vpop.f32.mrf.mxu0
    %v657 = vadd.f32 %v597, %v656
    %v658 = vpop.f32.mrf.mxu0
    %659 = vdwg.mxu0
    %v660 = vpack.c.bf16 %v657, %v657
    %661 = vst [vmem:[#allocation14] sm:$0xf] %v660
    // Predicated region
    $region82: #{tpu_custom_call.1} parent=1 // pred_check
      _
    $region83: #{tpu_custom_call.1} parent=1 // pred_check_branch
      %663 = sbr.rel (0) target = $region85
    $region84: #{tpu_custom_call.1} parent=1 // pred_region
      %665 = vsyncadd [#allocation4], 0
      %s667 = sshll.u32 [#allocation14], 4
      %s668 = int_to_ptr.vmem [resolvable:$true] %s667
      %s669 = sshll.u32 %s13, 4
      %s670 = int_to_ptr.hbm [resolvable:$true] %s669
      %672 = dma.vmem_to_hbm [thread:$0]  %s668, 64, %s670, [#allocation4]
    $region85: #{tpu_custom_call.1} parent=1 // pred_fallthru
      _
    // Predicated region
    $region86: #{tpu_custom_call.1} parent=1 // pred_check
      _
    $region87: #{tpu_custom_call.1} parent=1 // pred_check_branch
      %674 = sbr.rel (0) target = $region89
    $region88: #{tpu_custom_call.1} parent=1 // pred_region
      %676 = dma.done [#allocation4], 64
    $region89: #{tpu_custom_call.1} parent=1 // pred_fallthru
      _
    %677 = vsyncpa [#allocation3], 1
    %678 = vsyncpa [#allocation6], 1
    %679 = vsyncpa [#allocation9], 1
    %680 = vsyncpa [#allocation12], 1
    %681 = vsyncpa [#allocation4], 1

</llo_original>
